<compile_context>
chip_gen: v7x
topology: tpu7x:2x2x1
jax: 0.10.0
libtpu: 0.0.40
codegen_flags: <defaults>
</compile_context>

<pallas_src>
import jax
import jax.numpy as jnp
from jax.experimental import pallas as pl
from jax.experimental.pallas import tpu as pltpu


def _qa_kernel(a_ref, q_ref, w1a_ref, w1b_ref, b1_ref, w2_ref, b2_ref, out_ref):
    # a_ref   : (tb, emb)      f32 (or bf16) activations -- cast in-kernel
    # q_ref   : (tb, emb)      f32 (or bf16)
    # w1a_ref : (emb, hidden)  bf16  (top half of fc1 weight, transposed)
    # w1b_ref : (emb, hidden)  bf16  (bottom half of fc1 weight, transposed)
    # b1_ref  : (1, hidden)    f32
    # w2_ref  : (hidden, nopt) bf16  (fc2 weight, transposed)
    # b2_ref  : (1, nopt)      f32
    # out_ref : (tb, nopt)     f32
    a = a_ref[...].astype(jnp.bfloat16)   # in-kernel cast (no-op if already bf16)
    q = q_ref[...].astype(jnp.bfloat16)
    # Fused concat: concat(a, q) @ W1 == a @ W1a + q @ W1b
    h = jnp.dot(a, w1a_ref[...], preferred_element_type=jnp.float32)
    h = h + jnp.dot(q, w1b_ref[...], preferred_element_type=jnp.float32)
    h = h + b1_ref[...]
    h = jnp.maximum(h, 0.0)  # ReLU (f32)
    logits = jnp.dot(
        h.astype(jnp.bfloat16), w2_ref[...], preferred_element_type=jnp.float32
    )
    out_ref[...] = (logits + b2_ref[...]).astype(out_ref.dtype)


def _pick_batch_tile(batch, *, max_tile=1024, step=256):
    """>=4 grid steps (2 per v7x TensorCore), multiple of `step`, capped at max_tile."""
    t = (batch // 4) // step * step
    return max(step, min(max_tile, t))


def qa_model_forward(
    article_emb,
    question_emb,
    options_emb,
    params,
    *,
    max_batch_tile=1024,
    small_batch_threshold=512,
):
    """Pallas implementation of QAModel.forward.

    article_emb, question_emb: (B, emb_dim) -- any float dtype, cast in-kernel
    options_emb: unused (the reference forward never reads it)
    params: dict with
        w1a, w1b : (emb_dim, hidden) bf16  (fc1 weight split + transposed;
                                            article half first -- matches
                                            torch.cat((article, question), -1))
        b1       : (hidden,)         f32
        w2       : (hidden, n_opt)   bf16  (fc2 weight transposed)
        b2       : (n_opt,)          f32
    """
    del options_emb  # unused in the reference forward pass
    B, emb = article_emb.shape
    hidden = params["w1a"].shape[1]
    n_opt = params["w2"].shape[1]

    w1a = params["w1a"].astype(jnp.bfloat16)  # no-ops if stored bf16
    w1b = params["w1b"].astype(jnp.bfloat16)
    w2 = params["w2"].astype(jnp.bfloat16)
    b1 = params["b1"].reshape(1, hidden).astype(jnp.float32)
    b2 = params["b2"].reshape(1, n_opt).astype(jnp.float32)

    out_shape = jax.ShapeDtypeStruct((B, n_opt), jnp.float32)
    args = (article_emb, question_emb, w1a, w1b, b1, w2, b2)

    if B <= small_batch_threshold:
        # Small batch (serving): grid-less call -- everything resident in VMEM,
        # no dead double-buffering of the weights, no per-step pipeline overhead.
        # TODO(synk): prefetch W1a/W1b/W2 across calls (P10 cross-call futures)
        # so the ~770 KiB weight DMA is hidden behind preceding work.
        return pl.pallas_call(_qa_kernel, out_shape=out_shape)(*args)

    # Large batch: tile rows with a cdiv grid (partial last tile is padded on
    # read and masked on writeback -- per-row independence keeps it correct).
    # "parallel" lets v7x's two TensorCores split the steps; weight block
    # indices are constant across the grid so their DMA is not repeated.
    tb = _pick_batch_tile(B, max_tile=max_batch_tile)
    grid = (pl.cdiv(B, tb),)
    return pl.pallas_call(
        _qa_kernel,
        out_shape=out_shape,
        grid_spec=pltpu.PrefetchScalarGridSpec(
            num_scalar_prefetch=0,
            grid=grid,
            in_specs=[
                pl.BlockSpec((tb, emb), lambda i: (i, 0)),
                pl.BlockSpec((tb, emb), lambda i: (i, 0)),
                pl.BlockSpec((emb, hidden), lambda i: (0, 0)),
                pl.BlockSpec((emb, hidden), lambda i: (0, 0)),
                pl.BlockSpec((1, hidden), lambda i: (0, 0)),
                pl.BlockSpec((hidden, n_opt), lambda i: (0, 0)),
                pl.BlockSpec((1, n_opt), lambda i: (0, 0)),
            ],
            out_specs=pl.BlockSpec((tb, n_opt), lambda i: (i, 0)),
        ),
        compiler_params=pltpu.CompilerParams(
            dimension_semantics=("parallel",),
            # f32 activation tiles at tb=1024 (double-buffered a+q ~12 MiB)
            # exceed v5e's 16 MiB scoped default; raise it (still < v7x's
            # 64 MiB physical VMEM).
            vmem_limit_bytes=48 * 1024 * 1024,
        ),
    )(*args)


def init_params(key, emb_dim, hidden_dim, num_options):
    """Synthetic parameters matching nn.Linear init, stored transposed (in, out).
    fc1's weight is pre-split into the article half (w1a) and question half (w1b)
    so the concat can be fused into the kernel. Weights bf16, biases f32."""
    input_dim = 2 * emb_dim
    k1, k2, k3, k4 = jax.random.split(key, 4)
    s1 = 1.0 / jnp.sqrt(jnp.float32(input_dim))
    s2 = 1.0 / jnp.sqrt(jnp.float32(hidden_dim))
    w1 = jax.random.uniform(k1, (input_dim, hidden_dim), jnp.float32, -s1, s1)
    return {
        "w1a": w1[:emb_dim, :].astype(jnp.bfloat16),
        "w1b": w1[emb_dim:, :].astype(jnp.bfloat16),
        "b1": jax.random.uniform(k2, (hidden_dim,), jnp.float32, -s1, s1),
        "w2": jax.random.uniform(
            k3, (hidden_dim, num_options), jnp.float32, -s2, s2
        ).astype(jnp.bfloat16),
        "b2": jax.random.uniform(k4, (num_options,), jnp.float32, -s2, s2),
    }


if __name__ == "__main__":
    emb_dim = 768            # per-input embedding size (article / question)
    hidden_dim = 256
    num_options = 4

    key = jax.random.PRNGKey(0)
    k_a, k_q, k_o, k_p, k_a2, k_q2 = jax.random.split(key, 6)

    params = init_params(k_p, emb_dim, hidden_dim, num_options)

    def reference(a, q):
        # Pure-JAX reference of the same math (bf16-rounded operands, f32 accum),
        # mirroring what the kernel computes on the MXU.
        a32 = a.astype(jnp.bfloat16).astype(jnp.float32)
        q32 = q.astype(jnp.bfloat16).astype(jnp.float32)
        w1a32 = params["w1a"].astype(jnp.float32)
        w1b32 = params["w1b"].astype(jnp.float32)
        w2_32 = params["w2"].astype(jnp.float32)
        h = jnp.maximum(a32 @ w1a32 + q32 @ w1b32 + params["b1"][None, :], 0.0)
        return h.astype(jnp.bfloat16).astype(jnp.float32) @ w2_32 + params["b2"][None, :]

    # --- Small-batch (grid-less serving) path ---
    batch = 2
    article_emb = jax.random.normal(k_a, (batch, emb_dim), jnp.float32)
    question_emb = jax.random.normal(k_q, (batch, emb_dim), jnp.float32)
    options_emb = jax.random.normal(k_o, (batch, num_options, emb_dim), jnp.float32)

    logits = qa_model_forward(article_emb, question_emb, options_emb, params)
    logits = jax.block_until_ready(logits)
    ref = reference(article_emb, question_emb)
    assert logits.shape == (batch, num_options)
    assert jnp.allclose(logits, ref, atol=2e-2, rtol=2e-2), (
        jnp.max(jnp.abs(logits - ref))
    )

    # --- Large-batch (tiled, cdiv grid with a partial last tile) path ---
    big_batch = 1000  # deliberately not a multiple of the tile size
    a_big = jax.random.normal(k_a2, (big_batch, emb_dim), jnp.float32)
    q_big = jax.random.normal(k_q2, (big_batch, emb_dim), jnp.float32)
    logits_big = qa_model_forward(a_big, q_big, None, params)
    logits_big = jax.block_until_ready(logits_big)
    ref_big = reference(a_big, q_big)
    assert logits_big.shape == (big_batch, num_options)
    assert jnp.allclose(logits_big, ref_big, atol=2e-2, rtol=2e-2), (
        jnp.max(jnp.abs(logits_big - ref_big))
    )

    print("KERNEL_OK")
</pallas_src>

<mosaic_0001>
module attributes {stable_mosaic.version = 11 : i64} {
  func.func @_qa_kernel(%arg0: memref<2x768xf32, #tpu.memory_space<vmem>>, %arg1: memref<2x768xf32, #tpu.memory_space<vmem>>, %arg2: memref<768x256xbf16, #tpu.memory_space<vmem>>, %arg3: memref<768x256xbf16, #tpu.memory_space<vmem>>, %arg4: memref<1x256xf32, #tpu.memory_space<vmem>>, %arg5: memref<256x4xbf16, #tpu.memory_space<vmem>>, %arg6: memref<1x4xf32, #tpu.memory_space<vmem>>, %arg7: memref<2x4xf32, #tpu.memory_space<vmem>>) attributes {dimension_semantics = [], scalar_prefetch = 0 : i64, scratch_operands = 0 : i64, tpu.core_type = #tpu.core_type<tc>} {
    %c0 = arith.constant 0 : index
    %c0_0 = arith.constant 0 : index
    %0 = vector.load %arg0[%c0, %c0_0] : memref<2x768xf32, #tpu.memory_space<vmem>>, vector<2x768xf32>
    %1 = arith.truncf %0 : vector<2x768xf32> to vector<2x768xbf16>
    %c0_1 = arith.constant 0 : index
    %c0_2 = arith.constant 0 : index
    %2 = vector.load %arg1[%c0_1, %c0_2] : memref<2x768xf32, #tpu.memory_space<vmem>>, vector<2x768xf32>
    %3 = arith.truncf %2 : vector<2x768xf32> to vector<2x768xbf16>
    %c0_3 = arith.constant 0 : index
    %c0_4 = arith.constant 0 : index
    %4 = vector.load %arg2[%c0_3, %c0_4] : memref<768x256xbf16, #tpu.memory_space<vmem>>, vector<768x256xbf16>
    %cst = arith.constant dense<0.000000e+00> : vector<2x256xf32>
    %5 = tpu.matmul %1, %4, %cst {dimension_numbers = #tpu.dot_dimension_numbers<[1], [0], [0], [1], [0, 0, 1, 1], [], []>} : vector<2x768xbf16>, vector<768x256xbf16>, vector<2x256xf32> -> vector<2x256xf32>
    %c0_5 = arith.constant 0 : index
    %c0_6 = arith.constant 0 : index
    %6 = vector.load %arg3[%c0_5, %c0_6] : memref<768x256xbf16, #tpu.memory_space<vmem>>, vector<768x256xbf16>
    %cst_7 = arith.constant dense<0.000000e+00> : vector<2x256xf32>
    %7 = tpu.matmul %3, %6, %cst_7 {dimension_numbers = #tpu.dot_dimension_numbers<[1], [0], [0], [1], [0, 0, 1, 1], [], []>} : vector<2x768xbf16>, vector<768x256xbf16>, vector<2x256xf32> -> vector<2x256xf32>
    %8 = arith.addf %5, %7 : vector<2x256xf32>
    %c0_8 = arith.constant 0 : index
    %c0_9 = arith.constant 0 : index
    %9 = vector.load %arg4[%c0_8, %c0_9] : memref<1x256xf32, #tpu.memory_space<vmem>>, vector<1x256xf32>
    %10 = vector.broadcast %9 : vector<1x256xf32> to vector<2x256xf32>
    %11 = arith.addf %8, %10 : vector<2x256xf32>
    %cst_10 = arith.constant 0.000000e+00 : f32
    %12 = vector.broadcast %cst_10 : f32 to vector<2x256xf32>
    %13 = arith.maximumf %11, %12 : vector<2x256xf32>
    %14 = arith.truncf %13 : vector<2x256xf32> to vector<2x256xbf16>
    %c0_11 = arith.constant 0 : index
    %c0_12 = arith.constant 0 : index
    %15 = vector.load %arg5[%c0_11, %c0_12] : memref<256x4xbf16, #tpu.memory_space<vmem>>, vector<256x4xbf16>
    %cst_13 = arith.constant dense<0.000000e+00> : vector<2x4xf32>
    %16 = tpu.matmul %14, %15, %cst_13 {dimension_numbers = #tpu.dot_dimension_numbers<[1], [0], [0], [1], [0, 0, 1, 1], [], []>} : vector<2x256xbf16>, vector<256x4xbf16>, vector<2x4xf32> -> vector<2x4xf32>
    %c0_14 = arith.constant 0 : index
    %c0_15 = arith.constant 0 : index
    %17 = vector.load %arg6[%c0_14, %c0_15] : memref<1x4xf32, #tpu.memory_space<vmem>>, vector<1x4xf32>
    %18 = vector.broadcast %17 : vector<1x4xf32> to vector<2x4xf32>
    %19 = arith.addf %16, %18 : vector<2x4xf32>
    %c0_16 = arith.constant 0 : index
    %c0_17 = arith.constant 0 : index
    %20 = vector.load %arg7[%c0_16, %c0_17] : memref<2x4xf32, #tpu.memory_space<vmem>>, vector<2x4xf32>
    tpu.vector_store %arg7[%c0_16, %c0_17], %19 {strides = array<i32>} : memref<2x4xf32, #tpu.memory_space<vmem>>, vector<2x4xf32>,
    return
  }
}

</mosaic_0001>

<llo_original>
// kernel: tpu_custom_call.1
$region0: #{tpu_custom_call.1}
  #allocation0 [shape = 'u32[]', space=smem, size = 0x4, offset = 0x4, fixed_abs, tag = 'smem constant byte address 0x4 - core index']
  #allocation1 [shape = 'u32[144,128]{1,0:T(1,128)}', space=vmem, size = 0x12000, scoped, tag = 'internal scratch']
  %s0 = inlined_call_operand.vmem [shape: f32[2,768], index: 0, kind: input, shape index: {}]
  %s1 = inlined_call_operand.vmem [shape: f32[2,768], index: 1, kind: input, shape index: {}]
  %s2 = inlined_call_operand.hbm [shape: bf16[768,256], index: 2, kind: input, shape index: {}]
  %s3 = inlined_call_operand.hbm [shape: bf16[768,256], index: 3, kind: input, shape index: {}]
  %s4 = inlined_call_operand.vmem [shape: f32[1,256], index: 4, kind: input, shape index: {}]
  %s5 = inlined_call_operand.vmem [shape: bf16[256,4], index: 5, kind: input, shape index: {}]
  %s6 = inlined_call_operand.vmem [shape: f32[1,4], index: 6, kind: input, shape index: {}]
  %s7 = inlined_call_operand.hbm [shape: f32[2,4], index: 7, kind: output, shape index: {}]
  %s8 = sld [smem:[#allocation0]]
  $region46: #{tpu_custom_call.1} parent=0
    _
  %s10 = ssub.s32 1, %s8
  %s11 = scalar_select 0, %s10, %s8
  $region1: #{tpu_custom_call.1} parent=0
    #allocation2 [shape = 'u8[393216]{0}', space=vmem, size = 0x60000, scoped, tag = 'input window, operand 2, single buffered']
    #allocation3 [shape = 's32[1]{0}', space=sflag, size = 0x4, scoped, tag = 'scoped memory for tpu_custom_call.1']
    #allocation4 [shape = 's32[1]{0}', space=sflag, size = 0x4, scoped, tag = 'scoped memory for tpu_custom_call.1']
    #allocation5 [shape = 'u8[393216]{0}', space=vmem, size = 0x60000, scoped, tag = 'input window, operand 3, single buffered']
    #allocation6 [shape = 's32[1]{0}', space=sflag, size = 0x4, scoped, tag = 'scoped memory for tpu_custom_call.1']
    #allocation7 [shape = 'u8[1024]{0}', space=vmem, size = 0x400, scoped, tag = 'output window, operand 0, single buffered']
    %12 = vsyncpa [#allocation3], 0
    %13 = vsyncpa [#allocation6], 0
    %14 = vsyncpa [#allocation4], 0
    // Predicated region
    $region2: #{tpu_custom_call.1} parent=1 // pred_check
      _
    $region3: #{tpu_custom_call.1} parent=1 // pred_check_branch
      %16 = sbr.rel (0) target = $region5
    $region4: #{tpu_custom_call.1} parent=1 // pred_region
      _
    $region5: #{tpu_custom_call.1} parent=1 // pred_fallthru
      _
    // Predicated region
    $region6: #{tpu_custom_call.1} parent=1 // pred_check
      _
    $region7: #{tpu_custom_call.1} parent=1 // pred_check_branch
      %18 = sbr.rel (0) target = $region9
    $region8: #{tpu_custom_call.1} parent=1 // pred_region
      _
    $region9: #{tpu_custom_call.1} parent=1 // pred_fallthru
      _
    // Predicated region
    $region10: #{tpu_custom_call.1} parent=1 // pred_check
      _
    $region11: #{tpu_custom_call.1} parent=1 // pred_check_branch
      %20 = sbr.rel (0) target = $region13
    $region12: #{tpu_custom_call.1} parent=1 // pred_region
      %s22 = ssub.s32 12288, 12288
      %23 = vsyncadd [#allocation3], %s22
      %s24 = sshll.u32 [#allocation2], 4
      %s25 = int_to_ptr.vmem [resolvable:$true] %s24
      %30 = dma.hbm_to_vmem [thread:$0]  %s2, 12288, %s25, [#allocation3], 128, 128, 8
    $region13: #{tpu_custom_call.1} parent=1 // pred_fallthru
      _
    // Predicated region
    $region14: #{tpu_custom_call.1} parent=1 // pred_check
      _
    $region15: #{tpu_custom_call.1} parent=1 // pred_check_branch
      %32 = sbr.rel (0) target = $region17
    $region16: #{tpu_custom_call.1} parent=1 // pred_region
      %s34 = ssub.s32 12288, 12288
      %35 = vsyncadd [#allocation6], %s34
      %s36 = sshll.u32 [#allocation5], 4
      %s37 = int_to_ptr.vmem [resolvable:$true] %s36
      %42 = dma.hbm_to_vmem [thread:$0]  %s3, 12288, %s37, [#allocation6], 128, 128, 8
    $region17: #{tpu_custom_call.1} parent=1 // pred_fallthru
      _
    // Predicated region
    $region18: #{tpu_custom_call.1} parent=1 // pred_check
      _
    $region19: #{tpu_custom_call.1} parent=1 // pred_check_branch
      %44 = sbr.rel (0) target = $region21
    $region20: #{tpu_custom_call.1} parent=1 // pred_region
      _
    $region21: #{tpu_custom_call.1} parent=1 // pred_fallthru
      _
    // Predicated region
    $region22: #{tpu_custom_call.1} parent=1 // pred_check
      _
    $region23: #{tpu_custom_call.1} parent=1 // pred_check_branch
      %46 = sbr.rel (0) target = $region25
    $region24: #{tpu_custom_call.1} parent=1 // pred_region
      _
    $region25: #{tpu_custom_call.1} parent=1 // pred_fallthru
      _
    // Predicated region
    $region26: #{tpu_custom_call.1} parent=1 // pred_check
      _
    $region27: #{tpu_custom_call.1} parent=1 // pred_check_branch
      %48 = sbr.rel (0) target = $region29
    $region28: #{tpu_custom_call.1} parent=1 // pred_region
      _
    $region29: #{tpu_custom_call.1} parent=1 // pred_fallthru
      _
    // Predicated region
    $region30: #{tpu_custom_call.1} parent=1 // pred_check
      _
    $region31: #{tpu_custom_call.1} parent=1 // pred_check_branch
      %50 = sbr.rel (0) target = $region33
    $region32: #{tpu_custom_call.1} parent=1 // pred_region
      %51 = dma.done [#allocation3], 12288
    $region33: #{tpu_custom_call.1} parent=1 // pred_fallthru
      _
    // Predicated region
    $region34: #{tpu_custom_call.1} parent=1 // pred_check
      _
    $region35: #{tpu_custom_call.1} parent=1 // pred_check_branch
      %53 = sbr.rel (0) target = $region37
    $region36: #{tpu_custom_call.1} parent=1 // pred_region
      %54 = dma.done [#allocation6], 12288
    $region37: #{tpu_custom_call.1} parent=1 // pred_fallthru
      _
    %v56 = vld [vmem:[%s0] sm:$0xff]
    %v57 = vld [vmem:[%s0 + $0x8] sm:$0xf]
    %v60 = vcombine.high %v56, %v56
    %v62 = vunpack.c.l.s4 1983009808
    %v63 = vunpack.c.0.s8 %v62
    %v64 = vlaneseq
    %v65 = vshrl.u32 %v64, 7
    %v66 = vsub.s32 %v63, %v65
    %v67 = vrot.slane %v56, %v66
    %v69 = vunpack.c.l.s4 1983009808
    %v70 = vunpack.c.0.s8 %v69
    %v71 = vlaneseq
    %v72 = vshrl.u32 %v71, 7
    %v73 = vsub.s32 %v70, %v72
    %v74 = vrot.slane %v60, %v73
    %v75 = vcombine.high %v67, %v67
    %v76 = vcombine.high %v74, %v74
    %v78 = vunpack.c.l.s4 1983009808
    %v79 = vunpack.c.0.s8 %v78
    %v80 = vlaneseq
    %v81 = vshrl.u32 %v80, 7
    %v82 = vsub.s32 %v79, %v81
    %v83 = vrot.slane %v57, %v82
    %v84 = vcombine.high %v83, %v83
    %v91 = vpack.c.bf16 %v67, %v67
    %v92 = vpack.c.bf16 %v75, %v75
    %v93 = vpack.c.bf16 %v74, %v74
    %v94 = vpack.c.bf16 %v76, %v76
    %v95 = vpack.c.bf16 %v83, %v83
    %v96 = vpack.c.bf16 %v84, %v84
    %v97 = vld [vmem:[%s1] sm:$0xff]
    %v98 = vld [vmem:[%s1 + $0x8] sm:$0xf]
    %v101 = vcombine.high %v97, %v97
    %v103 = vunpack.c.l.s4 1983009808
    %v104 = vunpack.c.0.s8 %v103
    %v105 = vlaneseq
    %v106 = vshrl.u32 %v105, 7
    %v107 = vsub.s32 %v104, %v106
    %v108 = vrot.slane %v97, %v107
    %v110 = vunpack.c.l.s4 1983009808
    %v111 = vunpack.c.0.s8 %v110
    %v112 = vlaneseq
    %v113 = vshrl.u32 %v112, 7
    %v114 = vsub.s32 %v111, %v113
    %v115 = vrot.slane %v101, %v114
    %v116 = vcombine.high %v108, %v108
    %v117 = vcombine.high %v115, %v115
    %v119 = vunpack.c.l.s4 1983009808
    %v120 = vunpack.c.0.s8 %v119
    %v121 = vlaneseq
    %v122 = vshrl.u32 %v121, 7
    %v123 = vsub.s32 %v120, %v122
    %v124 = vrot.slane %v98, %v123
    %v125 = vcombine.high %v124, %v124
    %v132 = vpack.c.bf16 %v108, %v108
    %v133 = vpack.c.bf16 %v116, %v116
    %v134 = vpack.c.bf16 %v115, %v115
    %v135 = vpack.c.bf16 %v117, %v117
    %v136 = vpack.c.bf16 %v124, %v124
    %v137 = vpack.c.bf16 %v125, %v125
    %v138 = vld [vmem:[#allocation2] sm:$0xff]
    %v139 = vld [vmem:[#allocation2 + $0x8] sm:$0xff]
    %v140 = vld [vmem:[#allocation2 + $0x10] sm:$0xff]
    %v141 = vld [vmem:[#allocation2 + $0x18] sm:$0xff]
    %v142 = vld [vmem:[#allocation2 + $0x20] sm:$0xff]
    %v143 = vld [vmem:[#allocation2 + $0x28] sm:$0xff]
    %v144 = vld [vmem:[#allocation2 + $0x30] sm:$0xff]
    %v145 = vld [vmem:[#allocation2 + $0x38] sm:$0xff]
    %v146 = vld [vmem:[#allocation2 + $0x40] sm:$0xff]
    %v147 = vld [vmem:[#allocation2 + $0x48] sm:$0xff]
    %v148 = vld [vmem:[#allocation2 + $0x50] sm:$0xff]
    %v149 = vld [vmem:[#allocation2 + $0x58] sm:$0xff]
    %v150 = vld [vmem:[#allocation2 + $0x60] sm:$0xff]
    %v151 = vld [vmem:[#allocation2 + $0x68] sm:$0xff]
    %v152 = vld [vmem:[#allocation2 + $0x70] sm:$0xff]
    %v153 = vld [vmem:[#allocation2 + $0x78] sm:$0xff]
    %v154 = vld [vmem:[#allocation2 + $0x80] sm:$0xff]
    %v155 = vld [vmem:[#allocation2 + $0x88] sm:$0xff]
    %v156 = vld [vmem:[#allocation2 + $0x90] sm:$0xff]
    %v157 = vld [vmem:[#allocation2 + $0x98] sm:$0xff]
    %v158 = vld [vmem:[#allocation2 + $0xa0] sm:$0xff]
    %v159 = vld [vmem:[#allocation2 + $0xa8] sm:$0xff]
    %v160 = vld [vmem:[#allocation2 + $0xb0] sm:$0xff]
    %v161 = vld [vmem:[#allocation2 + $0xb8] sm:$0xff]
    %v162 = vld [vmem:[#allocation2 + $0xc0] sm:$0xff]
    %v163 = vld [vmem:[#allocation2 + $0xc8] sm:$0xff]
    %v164 = vld [vmem:[#allocation2 + $0xd0] sm:$0xff]
    %v165 = vld [vmem:[#allocation2 + $0xd8] sm:$0xff]
    %v166 = vld [vmem:[#allocation2 + $0xe0] sm:$0xff]
    %v167 = vld [vmem:[#allocation2 + $0xe8] sm:$0xff]
    %v168 = vld [vmem:[#allocation2 + $0xf0] sm:$0xff]
    %v169 = vld [vmem:[#allocation2 + $0xf8] sm:$0xff]
    %v170 = vld [vmem:[#allocation2 + $0x100] sm:$0xff]
    %v171 = vld [vmem:[#allocation2 + $0x108] sm:$0xff]
    %v172 = vld [vmem:[#allocation2 + $0x110] sm:$0xff]
    %v173 = vld [vmem:[#allocation2 + $0x118] sm:$0xff]
    %v174 = vld [vmem:[#allocation2 + $0x120] sm:$0xff]
    %v175 = vld [vmem:[#allocation2 + $0x128] sm:$0xff]
    %v176 = vld [vmem:[#allocation2 + $0x130] sm:$0xff]
    %v177 = vld [vmem:[#allocation2 + $0x138] sm:$0xff]
    %v178 = vld [vmem:[#allocation2 + $0x140] sm:$0xff]
    %v179 = vld [vmem:[#allocation2 + $0x148] sm:$0xff]
    %v180 = vld [vmem:[#allocation2 + $0x150] sm:$0xff]
    %v181 = vld [vmem:[#allocation2 + $0x158] sm:$0xff]
    %v182 = vld [vmem:[#allocation2 + $0x160] sm:$0xff]
    %v183 = vld [vmem:[#allocation2 + $0x168] sm:$0xff]
    %v184 = vld [vmem:[#allocation2 + $0x170] sm:$0xff]
    %v185 = vld [vmem:[#allocation2 + $0x178] sm:$0xff]
    %v186 = vld [vmem:[#allocation2 + $0x180] sm:$0xff]
    %v187 = vld [vmem:[#allocation2 + $0x188] sm:$0xff]
    %v188 = vld [vmem:[#allocation2 + $0x190] sm:$0xff]
    %v189 = vld [vmem:[#allocation2 + $0x198] sm:$0xff]
    %v190 = vld [vmem:[#allocation2 + $0x1a0] sm:$0xff]
    %v191 = vld [vmem:[#allocation2 + $0x1a8] sm:$0xff]
    %v192 = vld [vmem:[#allocation2 + $0x1b0] sm:$0xff]
    %v193 = vld [vmem:[#allocation2 + $0x1b8] sm:$0xff]
    %v194 = vld [vmem:[#allocation2 + $0x1c0] sm:$0xff]
    %v195 = vld [vmem:[#allocation2 + $0x1c8] sm:$0xff]
    %v196 = vld [vmem:[#allocation2 + $0x1d0] sm:$0xff]
    %v197 = vld [vmem:[#allocation2 + $0x1d8] sm:$0xff]
    %v198 = vld [vmem:[#allocation2 + $0x1e0] sm:$0xff]
    %v199 = vld [vmem:[#allocation2 + $0x1e8] sm:$0xff]
    %v200 = vld [vmem:[#allocation2 + $0x1f0] sm:$0xff]
    %v201 = vld [vmem:[#allocation2 + $0x1f8] sm:$0xff]
    %v202 = vld [vmem:[#allocation2 + $0x200] sm:$0xff]
    %v203 = vld [vmem:[#allocation2 + $0x208] sm:$0xff]
    %v204 = vld [vmem:[#allocation2 + $0x210] sm:$0xff]
    %v205 = vld [vmem:[#allocation2 + $0x218] sm:$0xff]
    %v206 = vld [vmem:[#allocation2 + $0x220] sm:$0xff]
    %v207 = vld [vmem:[#allocation2 + $0x228] sm:$0xff]
    %v208 = vld [vmem:[#allocation2 + $0x230] sm:$0xff]
    %v209 = vld [vmem:[#allocation2 + $0x238] sm:$0xff]
    %v210 = vld [vmem:[#allocation2 + $0x240] sm:$0xff]
    %v211 = vld [vmem:[#allocation2 + $0x248] sm:$0xff]
    %v212 = vld [vmem:[#allocation2 + $0x250] sm:$0xff]
    %v213 = vld [vmem:[#allocation2 + $0x258] sm:$0xff]
    %v214 = vld [vmem:[#allocation2 + $0x260] sm:$0xff]
    %v215 = vld [vmem:[#allocation2 + $0x268] sm:$0xff]
    %v216 = vld [vmem:[#allocation2 + $0x270] sm:$0xff]
    %v217 = vld [vmem:[#allocation2 + $0x278] sm:$0xff]
    %v218 = vld [vmem:[#allocation2 + $0x280] sm:$0xff]
    %v219 = vld [vmem:[#allocation2 + $0x288] sm:$0xff]
    %v220 = vld [vmem:[#allocation2 + $0x290] sm:$0xff]
    %v221 = vld [vmem:[#allocation2 + $0x298] sm:$0xff]
    %v222 = vld [vmem:[#allocation2 + $0x2a0] sm:$0xff]
    %v223 = vld [vmem:[#allocation2 + $0x2a8] sm:$0xff]
    %v224 = vld [vmem:[#allocation2 + $0x2b0] sm:$0xff]
    %v225 = vld [vmem:[#allocation2 + $0x2b8] sm:$0xff]
    %v226 = vld [vmem:[#allocation2 + $0x2c0] sm:$0xff]
    %v227 = vld [vmem:[#allocation2 + $0x2c8] sm:$0xff]
    %v228 = vld [vmem:[#allocation2 + $0x2d0] sm:$0xff]
    %v229 = vld [vmem:[#allocation2 + $0x2d8] sm:$0xff]
    %v230 = vld [vmem:[#allocation2 + $0x2e0] sm:$0xff]
    %v231 = vld [vmem:[#allocation2 + $0x2e8] sm:$0xff]
    %v232 = vld [vmem:[#allocation2 + $0x2f0] sm:$0xff]
    %v233 = vld [vmem:[#allocation2 + $0x2f8] sm:$0xff]
    %v234 = vld [vmem:[#allocation5] sm:$0xff]
    %v235 = vld [vmem:[#allocation5 + $0x8] sm:$0xff]
    %v236 = vld [vmem:[#allocation5 + $0x10] sm:$0xff]
    %v237 = vld [vmem:[#allocation5 + $0x18] sm:$0xff]
    %v238 = vld [vmem:[#allocation5 + $0x20] sm:$0xff]
    %v239 = vld [vmem:[#allocation5 + $0x28] sm:$0xff]
    %v240 = vld [vmem:[#allocation5 + $0x30] sm:$0xff]
    %v241 = vld [vmem:[#allocation5 + $0x38] sm:$0xff]
    %v242 = vld [vmem:[#allocation5 + $0x40] sm:$0xff]
    %v243 = vld [vmem:[#allocation5 + $0x48] sm:$0xff]
    %v244 = vld [vmem:[#allocation5 + $0x50] sm:$0xff]
    %v245 = vld [vmem:[#allocation5 + $0x58] sm:$0xff]
    %v246 = vld [vmem:[#allocation5 + $0x60] sm:$0xff]
    %v247 = vld [vmem:[#allocation5 + $0x68] sm:$0xff]
    %v248 = vld [vmem:[#allocation5 + $0x70] sm:$0xff]
    %v249 = vld [vmem:[#allocation5 + $0x78] sm:$0xff]
    %v250 = vld [vmem:[#allocation5 + $0x80] sm:$0xff]
    %v251 = vld [vmem:[#allocation5 + $0x88] sm:$0xff]
    %v252 = vld [vmem:[#allocation5 + $0x90] sm:$0xff]
    %v253 = vld [vmem:[#allocation5 + $0x98] sm:$0xff]
    %v254 = vld [vmem:[#allocation5 + $0xa0] sm:$0xff]
    %v255 = vld [vmem:[#allocation5 + $0xa8] sm:$0xff]
    %v256 = vld [vmem:[#allocation5 + $0xb0] sm:$0xff]
    %v257 = vld [vmem:[#allocation5 + $0xb8] sm:$0xff]
    %v258 = vld [vmem:[#allocation5 + $0xc0] sm:$0xff]
    %v259 = vld [vmem:[#allocation5 + $0xc8] sm:$0xff]
    %v260 = vld [vmem:[#allocation5 + $0xd0] sm:$0xff]
    %v261 = vld [vmem:[#allocation5 + $0xd8] sm:$0xff]
    %v262 = vld [vmem:[#allocation5 + $0xe0] sm:$0xff]
    %v263 = vld [vmem:[#allocation5 + $0xe8] sm:$0xff]
    %v264 = vld [vmem:[#allocation5 + $0xf0] sm:$0xff]
    %v265 = vld [vmem:[#allocation5 + $0xf8] sm:$0xff]
    %v266 = vld [vmem:[#allocation5 + $0x100] sm:$0xff]
    %v267 = vld [vmem:[#allocation5 + $0x108] sm:$0xff]
    %v268 = vld [vmem:[#allocation5 + $0x110] sm:$0xff]
    %v269 = vld [vmem:[#allocation5 + $0x118] sm:$0xff]
    %v270 = vld [vmem:[#allocation5 + $0x120] sm:$0xff]
    %v271 = vld [vmem:[#allocation5 + $0x128] sm:$0xff]
    %v272 = vld [vmem:[#allocation5 + $0x130] sm:$0xff]
    %v273 = vld [vmem:[#allocation5 + $0x138] sm:$0xff]
    %v274 = vld [vmem:[#allocation5 + $0x140] sm:$0xff]
    %v275 = vld [vmem:[#allocation5 + $0x148] sm:$0xff]
    %v276 = vld [vmem:[#allocation5 + $0x150] sm:$0xff]
    %v277 = vld [vmem:[#allocation5 + $0x158] sm:$0xff]
    %v278 = vld [vmem:[#allocation5 + $0x160] sm:$0xff]
    %v279 = vld [vmem:[#allocation5 + $0x168] sm:$0xff]
    %v280 = vld [vmem:[#allocation5 + $0x170] sm:$0xff]
    %v281 = vld [vmem:[#allocation5 + $0x178] sm:$0xff]
    %v282 = vld [vmem:[#allocation5 + $0x180] sm:$0xff]
    %v283 = vld [vmem:[#allocation5 + $0x188] sm:$0xff]
    %v284 = vld [vmem:[#allocation5 + $0x190] sm:$0xff]
    %v285 = vld [vmem:[#allocation5 + $0x198] sm:$0xff]
    %v286 = vld [vmem:[#allocation5 + $0x1a0] sm:$0xff]
    %v287 = vld [vmem:[#allocation5 + $0x1a8] sm:$0xff]
    %v288 = vld [vmem:[#allocation5 + $0x1b0] sm:$0xff]
    %v289 = vld [vmem:[#allocation5 + $0x1b8] sm:$0xff]
    %v290 = vld [vmem:[#allocation5 + $0x1c0] sm:$0xff]
    %v291 = vld [vmem:[#allocation5 + $0x1c8] sm:$0xff]
    %v292 = vld [vmem:[#allocation5 + $0x1d0] sm:$0xff]
    %v293 = vld [vmem:[#allocation5 + $0x1d8] sm:$0xff]
    %v294 = vld [vmem:[#allocation5 + $0x1e0] sm:$0xff]
    %v295 = vld [vmem:[#allocation5 + $0x1e8] sm:$0xff]
    %v296 = vld [vmem:[#allocation5 + $0x1f0] sm:$0xff]
    %v297 = vld [vmem:[#allocation5 + $0x1f8] sm:$0xff]
    %v298 = vld [vmem:[#allocation5 + $0x200] sm:$0xff]
    %v299 = vld [vmem:[#allocation5 + $0x208] sm:$0xff]
    %v300 = vld [vmem:[#allocation5 + $0x210] sm:$0xff]
    %v301 = vld [vmem:[#allocation5 + $0x218] sm:$0xff]
    %v302 = vld [vmem:[#allocation5 + $0x220] sm:$0xff]
    %v303 = vld [vmem:[#allocation5 + $0x228] sm:$0xff]
    %v304 = vld [vmem:[#allocation5 + $0x230] sm:$0xff]
    %v305 = vld [vmem:[#allocation5 + $0x238] sm:$0xff]
    %v306 = vld [vmem:[#allocation5 + $0x240] sm:$0xff]
    %v307 = vld [vmem:[#allocation5 + $0x248] sm:$0xff]
    %v308 = vld [vmem:[#allocation5 + $0x250] sm:$0xff]
    %v309 = vld [vmem:[#allocation5 + $0x258] sm:$0xff]
    %v310 = vld [vmem:[#allocation5 + $0x260] sm:$0xff]
    %v311 = vld [vmem:[#allocation5 + $0x268] sm:$0xff]
    %v312 = vld [vmem:[#allocation5 + $0x270] sm:$0xff]
    %v313 = vld [vmem:[#allocation5 + $0x278] sm:$0xff]
    %v314 = vld [vmem:[#allocation5 + $0x280] sm:$0xff]
    %v315 = vld [vmem:[#allocation5 + $0x288] sm:$0xff]
    %v316 = vld [vmem:[#allocation5 + $0x290] sm:$0xff]
    %v317 = vld [vmem:[#allocation5 + $0x298] sm:$0xff]
    %v318 = vld [vmem:[#allocation5 + $0x2a0] sm:$0xff]
    %v319 = vld [vmem:[#allocation5 + $0x2a8] sm:$0xff]
    %v320 = vld [vmem:[#allocation5 + $0x2b0] sm:$0xff]
    %v321 = vld [vmem:[#allocation5 + $0x2b8] sm:$0xff]
    %v322 = vld [vmem:[#allocation5 + $0x2c0] sm:$0xff]
    %v323 = vld [vmem:[#allocation5 + $0x2c8] sm:$0xff]
    %v324 = vld [vmem:[#allocation5 + $0x2d0] sm:$0xff]
    %v325 = vld [vmem:[#allocation5 + $0x2d8] sm:$0xff]
    %v326 = vld [vmem:[#allocation5 + $0x2e0] sm:$0xff]
    %v327 = vld [vmem:[#allocation5 + $0x2e8] sm:$0xff]
    %v328 = vld [vmem:[#allocation5 + $0x2f0] sm:$0xff]
    %v329 = vld [vmem:[#allocation5 + $0x2f8] sm:$0xff]
    %v426 = vunpack.c.l.b16 %v234
    %v427 = vunpack.c.h.b16 %v234
    %v428 = vunpack.c.l.b16 %v235
    %v429 = vunpack.c.h.b16 %v235
    %v430 = vunpack.c.l.b16 %v236
    %v431 = vunpack.c.h.b16 %v236
    %v432 = vunpack.c.l.b16 %v237
    %v433 = vunpack.c.h.b16 %v237
    %v434 = vunpack.c.l.b16 %v238
    %v435 = vunpack.c.h.b16 %v238
    %v436 = vunpack.c.l.b16 %v239
    %v437 = vunpack.c.h.b16 %v239
    %v438 = vunpack.c.l.b16 %v240
    %v439 = vunpack.c.h.b16 %v240
    %v440 = vunpack.c.l.b16 %v241
    %v441 = vunpack.c.h.b16 %v241
    %v442 = vunpack.c.l.b16 %v242
    %v443 = vunpack.c.h.b16 %v242
    %v444 = vunpack.c.l.b16 %v243
    %v445 = vunpack.c.h.b16 %v243
    %v446 = vunpack.c.l.b16 %v244
    %v447 = vunpack.c.h.b16 %v244
    %v448 = vunpack.c.l.b16 %v245
    %v449 = vunpack.c.h.b16 %v245
    %v450 = vunpack.c.l.b16 %v246
    %v451 = vunpack.c.h.b16 %v246
    %v452 = vunpack.c.l.b16 %v247
    %v453 = vunpack.c.h.b16 %v247
    %v454 = vunpack.c.l.b16 %v248
    %v455 = vunpack.c.h.b16 %v248
    %v456 = vunpack.c.l.b16 %v249
    %v457 = vunpack.c.h.b16 %v249
    %v458 = vunpack.c.l.b16 %v250
    %v459 = vunpack.c.h.b16 %v250
    %v460 = vunpack.c.l.b16 %v251
    %v461 = vunpack.c.h.b16 %v251
    %v462 = vunpack.c.l.b16 %v252
    %v463 = vunpack.c.h.b16 %v252
    %v464 = vunpack.c.l.b16 %v253
    %v465 = vunpack.c.h.b16 %v253
    %v466 = vunpack.c.l.b16 %v254
    %v467 = vunpack.c.h.b16 %v254
    %v468 = vunpack.c.l.b16 %v255
    %v469 = vunpack.c.h.b16 %v255
    %v470 = vunpack.c.l.b16 %v256
    %v471 = vunpack.c.h.b16 %v256
    %v472 = vunpack.c.l.b16 %v257
    %v473 = vunpack.c.h.b16 %v257
    %v474 = vunpack.c.l.b16 %v258
    %v475 = vunpack.c.h.b16 %v258
    %v476 = vunpack.c.l.b16 %v259
    %v477 = vunpack.c.h.b16 %v259
    %v478 = vunpack.c.l.b16 %v260
    %v479 = vunpack.c.h.b16 %v260
    %v480 = vunpack.c.l.b16 %v261
    %v481 = vunpack.c.h.b16 %v261
    %v482 = vunpack.c.l.b16 %v262
    %v483 = vunpack.c.h.b16 %v262
    %v484 = vunpack.c.l.b16 %v263
    %v485 = vunpack.c.h.b16 %v263
    %v486 = vunpack.c.l.b16 %v264
    %v487 = vunpack.c.h.b16 %v264
    %v488 = vunpack.c.l.b16 %v265
    %v489 = vunpack.c.h.b16 %v265
    %v490 = vunpack.c.l.b16 %v266
    %v491 = vunpack.c.h.b16 %v266
    %v492 = vunpack.c.l.b16 %v267
    %v493 = vunpack.c.h.b16 %v267
    %v494 = vunpack.c.l.b16 %v268
    %v495 = vunpack.c.h.b16 %v268
    %v496 = vunpack.c.l.b16 %v269
    %v497 = vunpack.c.h.b16 %v269
    %v498 = vunpack.c.l.b16 %v270
    %v499 = vunpack.c.h.b16 %v270
    %v500 = vunpack.c.l.b16 %v271
    %v501 = vunpack.c.h.b16 %v271
    %v502 = vunpack.c.l.b16 %v272
    %v503 = vunpack.c.h.b16 %v272
    %v504 = vunpack.c.l.b16 %v273
    %v505 = vunpack.c.h.b16 %v273
    %v506 = vunpack.c.l.b16 %v274
    %v507 = vunpack.c.h.b16 %v274
    %v508 = vunpack.c.l.b16 %v275
    %v509 = vunpack.c.h.b16 %v275
    %v510 = vunpack.c.l.b16 %v276
    %v511 = vunpack.c.h.b16 %v276
    %v512 = vunpack.c.l.b16 %v277
    %v513 = vunpack.c.h.b16 %v277
    %v514 = vunpack.c.l.b16 %v278
    %v515 = vunpack.c.h.b16 %v278
    %v516 = vunpack.c.l.b16 %v279
    %v517 = vunpack.c.h.b16 %v279
    %v518 = vunpack.c.l.b16 %v280
    %v519 = vunpack.c.h.b16 %v280
    %v520 = vunpack.c.l.b16 %v281
    %v521 = vunpack.c.h.b16 %v281
    %v522 = vunpack.c.l.b16 %v282
    %v523 = vunpack.c.h.b16 %v282
    %v524 = vunpack.c.l.b16 %v283
    %v525 = vunpack.c.h.b16 %v283
    %v526 = vunpack.c.l.b16 %v284
    %v527 = vunpack.c.h.b16 %v284
    %v528 = vunpack.c.l.b16 %v285
    %v529 = vunpack.c.h.b16 %v285
    %v530 = vunpack.c.l.b16 %v286
    %v531 = vunpack.c.h.b16 %v286
    %v532 = vunpack.c.l.b16 %v287
    %v533 = vunpack.c.h.b16 %v287
    %v534 = vunpack.c.l.b16 %v288
    %v535 = vunpack.c.h.b16 %v288
    %v536 = vunpack.c.l.b16 %v289
    %v537 = vunpack.c.h.b16 %v289
    %v538 = vunpack.c.l.b16 %v290
    %v539 = vunpack.c.h.b16 %v290
    %v540 = vunpack.c.l.b16 %v291
    %v541 = vunpack.c.h.b16 %v291
    %v542 = vunpack.c.l.b16 %v292
    %v543 = vunpack.c.h.b16 %v292
    %v544 = vunpack.c.l.b16 %v293
    %v545 = vunpack.c.h.b16 %v293
    %v546 = vunpack.c.l.b16 %v294
    %v547 = vunpack.c.h.b16 %v294
    %v548 = vunpack.c.l.b16 %v295
    %v549 = vunpack.c.h.b16 %v295
    %v550 = vunpack.c.l.b16 %v296
    %v551 = vunpack.c.h.b16 %v296
    %v552 = vunpack.c.l.b16 %v297
    %v553 = vunpack.c.h.b16 %v297
    %v554 = vunpack.c.l.b16 %v298
    %v555 = vunpack.c.h.b16 %v298
    %v556 = vunpack.c.l.b16 %v299
    %v557 = vunpack.c.h.b16 %v299
    %v558 = vunpack.c.l.b16 %v300
    %v559 = vunpack.c.h.b16 %v300
    %v560 = vunpack.c.l.b16 %v301
    %v561 = vunpack.c.h.b16 %v301
    %v562 = vunpack.c.l.b16 %v302
    %v563 = vunpack.c.h.b16 %v302
    %v564 = vunpack.c.l.b16 %v303
    %v565 = vunpack.c.h.b16 %v303
    %v566 = vunpack.c.l.b16 %v304
    %v567 = vunpack.c.h.b16 %v304
    %v568 = vunpack.c.l.b16 %v305
    %v569 = vunpack.c.h.b16 %v305
    %v570 = vunpack.c.l.b16 %v306
    %v571 = vunpack.c.h.b16 %v306
    %v572 = vunpack.c.l.b16 %v307
    %v573 = vunpack.c.h.b16 %v307
    %v574 = vunpack.c.l.b16 %v308
    %v575 = vunpack.c.h.b16 %v308
    %v576 = vunpack.c.l.b16 %v309
    %v577 = vunpack.c.h.b16 %v309
    %v578 = vunpack.c.l.b16 %v310
    %v579 = vunpack.c.h.b16 %v310
    %v580 = vunpack.c.l.b16 %v311
    %v581 = vunpack.c.h.b16 %v311
    %v582 = vunpack.c.l.b16 %v312
    %v583 = vunpack.c.h.b16 %v312
    %v584 = vunpack.c.l.b16 %v313
    %v585 = vunpack.c.h.b16 %v313
    %v586 = vunpack.c.l.b16 %v314
    %v587 = vunpack.c.h.b16 %v314
    %v588 = vunpack.c.l.b16 %v315
    %v589 = vunpack.c.h.b16 %v315
    %v590 = vunpack.c.l.b16 %v316
    %v591 = vunpack.c.h.b16 %v316
    %v592 = vunpack.c.l.b16 %v317
    %v593 = vunpack.c.h.b16 %v317
    %v594 = vunpack.c.l.b16 %v318
    %v595 = vunpack.c.h.b16 %v318
    %v596 = vunpack.c.l.b16 %v319
    %v597 = vunpack.c.h.b16 %v319
    %v598 = vunpack.c.l.b16 %v320
    %v599 = vunpack.c.h.b16 %v320
    %v600 = vunpack.c.l.b16 %v321
    %v601 = vunpack.c.h.b16 %v321
    %v602 = vunpack.c.l.b16 %v322
    %v603 = vunpack.c.h.b16 %v322
    %v604 = vunpack.c.l.b16 %v323
    %v605 = vunpack.c.h.b16 %v323
    %v606 = vunpack.c.l.b16 %v324
    %v607 = vunpack.c.h.b16 %v324
    %v608 = vunpack.c.l.b16 %v325
    %v609 = vunpack.c.h.b16 %v325
    %v610 = vunpack.c.l.b16 %v326
    %v611 = vunpack.c.h.b16 %v326
    %v612 = vunpack.c.l.b16 %v327
    %v613 = vunpack.c.h.b16 %v327
    %v614 = vunpack.c.l.b16 %v328
    %v615 = vunpack.c.h.b16 %v328
    %v616 = vunpack.c.l.b16 %v329
    %v617 = vunpack.c.h.b16 %v329
    %v618 = vpack.c.b16 %v428, %v426
    %v619 = vpack.c.b16 %v429, %v427
    %v620 = vpack.c.b16 %v432, %v430
    %v621 = vpack.c.b16 %v433, %v431
    %v622 = vpack.c.b16 %v436, %v434
    %v623 = vpack.c.b16 %v437, %v435
    %v624 = vpack.c.b16 %v440, %v438
    %v625 = vpack.c.b16 %v441, %v439
    %v626 = vpack.c.b16 %v444, %v442
    %v627 = vpack.c.b16 %v445, %v443
    %v628 = vpack.c.b16 %v448, %v446
    %v629 = vpack.c.b16 %v449, %v447
    %v630 = vpack.c.b16 %v452, %v450
    %v631 = vpack.c.b16 %v453, %v451
    %v632 = vpack.c.b16 %v456, %v454
    %v633 = vpack.c.b16 %v457, %v455
    %v634 = vpack.c.b16 %v460, %v458
    %v635 = vpack.c.b16 %v461, %v459
    %v636 = vpack.c.b16 %v464, %v462
    %v637 = vpack.c.b16 %v465, %v463
    %v638 = vpack.c.b16 %v468, %v466
    %v639 = vpack.c.b16 %v469, %v467
    %v640 = vpack.c.b16 %v472, %v470
    %v641 = vpack.c.b16 %v473, %v471
    %v642 = vpack.c.b16 %v476, %v474
    %v643 = vpack.c.b16 %v477, %v475
    %v644 = vpack.c.b16 %v480, %v478
    %v645 = vpack.c.b16 %v481, %v479
    %v646 = vpack.c.b16 %v484, %v482
    %v647 = vpack.c.b16 %v485, %v483
    %v648 = vpack.c.b16 %v488, %v486
    %v649 = vpack.c.b16 %v489, %v487
    %v650 = vpack.c.b16 %v492, %v490
    %v651 = vpack.c.b16 %v493, %v491
    %v652 = vpack.c.b16 %v496, %v494
    %v653 = vpack.c.b16 %v497, %v495
    %v654 = vpack.c.b16 %v500, %v498
    %v655 = vpack.c.b16 %v501, %v499
    %v656 = vpack.c.b16 %v504, %v502
    %v657 = vpack.c.b16 %v505, %v503
    %v658 = vpack.c.b16 %v508, %v506
    %v659 = vpack.c.b16 %v509, %v507
    %v660 = vpack.c.b16 %v512, %v510
    %v661 = vpack.c.b16 %v513, %v511
    %v662 = vpack.c.b16 %v516, %v514
    %v663 = vpack.c.b16 %v517, %v515
    %v664 = vpack.c.b16 %v520, %v518
    %v665 = vpack.c.b16 %v521, %v519
    %v666 = vpack.c.b16 %v524, %v522
    %v667 = vpack.c.b16 %v525, %v523
    %v668 = vpack.c.b16 %v528, %v526
    %v669 = vpack.c.b16 %v529, %v527
    %v670 = vpack.c.b16 %v532, %v530
    %v671 = vpack.c.b16 %v533, %v531
    %v672 = vpack.c.b16 %v536, %v534
    %v673 = vpack.c.b16 %v537, %v535
    %v674 = vpack.c.b16 %v540, %v538
    %v675 = vpack.c.b16 %v541, %v539
    %v676 = vpack.c.b16 %v544, %v542
    %v677 = vpack.c.b16 %v545, %v543
    %v678 = vpack.c.b16 %v548, %v546
    %v679 = vpack.c.b16 %v549, %v547
    %v680 = vpack.c.b16 %v552, %v550
    %v681 = vpack.c.b16 %v553, %v551
    %v682 = vpack.c.b16 %v556, %v554
    %v683 = vpack.c.b16 %v557, %v555
    %v684 = vpack.c.b16 %v560, %v558
    %v685 = vpack.c.b16 %v561, %v559
    %v686 = vpack.c.b16 %v564, %v562
    %v687 = vpack.c.b16 %v565, %v563
    %v688 = vpack.c.b16 %v568, %v566
    %v689 = vpack.c.b16 %v569, %v567
    %v690 = vpack.c.b16 %v572, %v570
    %v691 = vpack.c.b16 %v573, %v571
    %v692 = vpack.c.b16 %v576, %v574
    %v693 = vpack.c.b16 %v577, %v575
    %v694 = vpack.c.b16 %v580, %v578
    %v695 = vpack.c.b16 %v581, %v579
    %v696 = vpack.c.b16 %v584, %v582
    %v697 = vpack.c.b16 %v585, %v583
    %v698 = vpack.c.b16 %v588, %v586
    %v699 = vpack.c.b16 %v589, %v587
    %v700 = vpack.c.b16 %v592, %v590
    %v701 = vpack.c.b16 %v593, %v591
    %v702 = vpack.c.b16 %v596, %v594
    %v703 = vpack.c.b16 %v597, %v595
    %v704 = vpack.c.b16 %v600, %v598
    %v705 = vpack.c.b16 %v601, %v599
    %v706 = vpack.c.b16 %v604, %v602
    %v707 = vpack.c.b16 %v605, %v603
    %v708 = vpack.c.b16 %v608, %v606
    %v709 = vpack.c.b16 %v609, %v607
    %v710 = vpack.c.b16 %v612, %v610
    %v711 = vpack.c.b16 %v613, %v611
    %v712 = vpack.c.b16 %v616, %v614
    %v713 = vpack.c.b16 %v617, %v615
    %810 = vmatprep.subr.bf16.mxu0 %v619
    %811 = vmatpush1.bf16.msra.mxu0 %v618
    %812 = vmatprep.subr.bf16.mxu0 %v621
    %813 = vmatpush1.bf16.msra.mxu0 %v620
    %814 = vmatprep.subr.bf16.mxu0 %v623
    %815 = vmatpush1.bf16.msra.mxu0 %v622
    %816 = vmatprep.subr.bf16.mxu0 %v625
    %817 = vmatpush1.bf16.msra.mxu0 %v624
    %818 = vmatprep.subr.bf16.mxu0 %v627
    %819 = vmatpush1.bf16.msra.mxu0 %v626
    %820 = vmatprep.subr.bf16.mxu0 %v629
    %821 = vmatpush1.bf16.msra.mxu0 %v628
    %822 = vmatprep.subr.bf16.mxu0 %v631
    %823 = vmatpush1.bf16.msra.mxu0 %v630
    %824 = vmatprep.subr.bf16.mxu0 %v633
    %825 = vmatpush1.bf16.msra.mxu0 %v632
    %826 = vmatprep.subr.bf16.mxu0 %v635
    %827 = vmatpush1.bf16.msra.mxu0 %v634
    %828 = vmatprep.subr.bf16.mxu0 %v637
    %829 = vmatpush1.bf16.msra.mxu0 %v636
    %830 = vmatprep.subr.bf16.mxu0 %v639
    %831 = vmatpush1.bf16.msra.mxu0 %v638
    %832 = vmatprep.subr.bf16.mxu0 %v641
    %833 = vmatpush1.bf16.msra.mxu0 %v640
    %834 = vmatprep.subr.bf16.mxu0 %v643
    %835 = vmatpush1.bf16.msra.mxu0 %v642
    %836 = vmatprep.subr.bf16.mxu0 %v645
    %837 = vmatpush1.bf16.msra.mxu0 %v644
    %838 = vmatprep.subr.bf16.mxu0 %v647
    %839 = vmatpush1.bf16.msra.mxu0 %v646
    %840 = vmatprep.subr.bf16.mxu0 %v649
    %841 = vmatpush1.bf16.msra.mxu0 %v648
    %842 = vmatprep.mubr.bf16.mxu0 %v133
    %843 = vmatmul.mubr.bf16.gmra.mrb[0].mxu0 %v132
    %v844 = vpop.f32.mrb[0].mxu0
    %v845 = vadd.f32 0.0, %v844
    %v846 = vpop.f32.mrb[0].mxu0
    %v847 = vadd.f32 0.0, %v846
    %v848 = vpop.f32.mrb[0].mxu0
    %v849 = vpop.f32.mrb[0].mxu0
    %850 = vdwg.mxu0
    %851 = vmatprep.subr.bf16.mxu0 %v651
    %852 = vmatpush1.bf16.msra.mxu0 %v650
    %853 = vmatprep.subr.bf16.mxu0 %v653
    %854 = vmatpush1.bf16.msra.mxu0 %v652
    %855 = vmatprep.subr.bf16.mxu0 %v655
    %856 = vmatpush1.bf16.msra.mxu0 %v654
    %857 = vmatprep.subr.bf16.mxu0 %v657
    %858 = vmatpush1.bf16.msra.mxu0 %v656
    %859 = vmatprep.subr.bf16.mxu0 %v659
    %860 = vmatpush1.bf16.msra.mxu0 %v658
    %861 = vmatprep.subr.bf16.mxu0 %v661
    %862 = vmatpush1.bf16.msra.mxu0 %v660
    %863 = vmatprep.subr.bf16.mxu0 %v663
    %864 = vmatpush1.bf16.msra.mxu0 %v662
    %865 = vmatprep.subr.bf16.mxu0 %v665
    %866 = vmatpush1.bf16.msra.mxu0 %v664
    %867 = vmatprep.subr.bf16.mxu0 %v667
    %868 = vmatpush1.bf16.msra.mxu0 %v666
    %869 = vmatprep.subr.bf16.mxu0 %v669
    %870 = vmatpush1.bf16.msra.mxu0 %v668
    %871 = vmatprep.subr.bf16.mxu0 %v671
    %872 = vmatpush1.bf16.msra.mxu0 %v670
    %873 = vmatprep.subr.bf16.mxu0 %v673
    %874 = vmatpush1.bf16.msra.mxu0 %v672
    %875 = vmatprep.subr.bf16.mxu0 %v675
    %876 = vmatpush1.bf16.msra.mxu0 %v674
    %877 = vmatprep.subr.bf16.mxu0 %v677
    %878 = vmatpush1.bf16.msra.mxu0 %v676
    %879 = vmatprep.subr.bf16.mxu0 %v679
    %880 = vmatpush1.bf16.msra.mxu0 %v678
    %881 = vmatprep.subr.bf16.mxu0 %v681
    %882 = vmatpush1.bf16.msra.mxu0 %v680
    %883 = vmatprep.mubr.bf16.mxu0 %v135
    %884 = vmatmul.mubr.bf16.gmra.mrb[0].mxu0 %v134
    %v885 = vpop.f32.mrb[0].mxu0
    %v886 = vadd.f32 %v845, %v885
    %v887 = vpop.f32.mrb[0].mxu0
    %v888 = vadd.f32 %v847, %v887
    %v889 = vpop.f32.mrb[0].mxu0
    %v890 = vpop.f32.mrb[0].mxu0
    %891 = vdwg.mxu0
    %892 = vmatprep.subr.bf16.mxu0 %v683
    %893 = vmatpush1.bf16.msra.mxu0 %v682
    %894 = vmatprep.subr.bf16.mxu0 %v685
    %895 = vmatpush1.bf16.msra.mxu0 %v684
    %896 = vmatprep.subr.bf16.mxu0 %v687
    %897 = vmatpush1.bf16.msra.mxu0 %v686
    %898 = vmatprep.subr.bf16.mxu0 %v689
    %899 = vmatpush1.bf16.msra.mxu0 %v688
    %900 = vmatprep.subr.bf16.mxu0 %v691
    %901 = vmatpush1.bf16.msra.mxu0 %v690
    %902 = vmatprep.subr.bf16.mxu0 %v693
    %903 = vmatpush1.bf16.msra.mxu0 %v692
    %904 = vmatprep.subr.bf16.mxu0 %v695
    %905 = vmatpush1.bf16.msra.mxu0 %v694
    %906 = vmatprep.subr.bf16.mxu0 %v697
    %907 = vmatpush1.bf16.msra.mxu0 %v696
    %908 = vmatprep.subr.bf16.mxu0 %v699
    %909 = vmatpush1.bf16.msra.mxu0 %v698
    %910 = vmatprep.subr.bf16.mxu0 %v701
    %911 = vmatpush1.bf16.msra.mxu0 %v700
    %912 = vmatprep.subr.bf16.mxu0 %v703
    %913 = vmatpush1.bf16.msra.mxu0 %v702
    %914 = vmatprep.subr.bf16.mxu0 %v705
    %915 = vmatpush1.bf16.msra.mxu0 %v704
    %916 = vmatprep.subr.bf16.mxu0 %v707
    %917 = vmatpush1.bf16.msra.mxu0 %v706
    %918 = vmatprep.subr.bf16.mxu0 %v709
    %919 = vmatpush1.bf16.msra.mxu0 %v708
    %920 = vmatprep.subr.bf16.mxu0 %v711
    %921 = vmatpush1.bf16.msra.mxu0 %v710
    %922 = vmatprep.subr.bf16.mxu0 %v713
    %923 = vmatpush1.bf16.msra.mxu0 %v712
    %924 = vmatprep.mubr.bf16.mxu0 %v137
    %925 = vmatmul.mubr.bf16.gmra.mrb[0].mxu0 %v136
    %v926 = vpop.f32.mrb[0].mxu0
    %v927 = vadd.f32 %v886, %v926
    %v928 = vpop.f32.mrb[0].mxu0
    %v929 = vadd.f32 %v888, %v928
    %v930 = vpop.f32.mrb[0].mxu0
    %v931 = vpop.f32.mrb[0].mxu0
    %932 = vdwg.mxu0
    %v1029 = vunpack.c.l.b16 %v138
    %v1030 = vunpack.c.h.b16 %v138
    %v1031 = vunpack.c.l.b16 %v139
    %v1032 = vunpack.c.h.b16 %v139
    %v1033 = vunpack.c.l.b16 %v140
    %v1034 = vunpack.c.h.b16 %v140
    %v1035 = vunpack.c.l.b16 %v141
    %v1036 = vunpack.c.h.b16 %v141
    %v1037 = vunpack.c.l.b16 %v142
    %v1038 = vunpack.c.h.b16 %v142
    %v1039 = vunpack.c.l.b16 %v143
    %v1040 = vunpack.c.h.b16 %v143
    %v1041 = vunpack.c.l.b16 %v144
    %v1042 = vunpack.c.h.b16 %v144
    %v1043 = vunpack.c.l.b16 %v145
    %v1044 = vunpack.c.h.b16 %v145
    %v1045 = vunpack.c.l.b16 %v146
    %v1046 = vunpack.c.h.b16 %v146
    %v1047 = vunpack.c.l.b16 %v147
    %v1048 = vunpack.c.h.b16 %v147
    %v1049 = vunpack.c.l.b16 %v148
    %v1050 = vunpack.c.h.b16 %v148
    %v1051 = vunpack.c.l.b16 %v149
    %v1052 = vunpack.c.h.b16 %v149
    %v1053 = vunpack.c.l.b16 %v150
    %v1054 = vunpack.c.h.b16 %v150
    %v1055 = vunpack.c.l.b16 %v151
    %v1056 = vunpack.c.h.b16 %v151
    %v1057 = vunpack.c.l.b16 %v152
    %v1058 = vunpack.c.h.b16 %v152
    %v1059 = vunpack.c.l.b16 %v153
    %v1060 = vunpack.c.h.b16 %v153
    %v1061 = vunpack.c.l.b16 %v154
    %v1062 = vunpack.c.h.b16 %v154
    %v1063 = vunpack.c.l.b16 %v155
    %v1064 = vunpack.c.h.b16 %v155
    %v1065 = vunpack.c.l.b16 %v156
    %v1066 = vunpack.c.h.b16 %v156
    %v1067 = vunpack.c.l.b16 %v157
    %v1068 = vunpack.c.h.b16 %v157
    %v1069 = vunpack.c.l.b16 %v158
    %v1070 = vunpack.c.h.b16 %v158
    %v1071 = vunpack.c.l.b16 %v159
    %v1072 = vunpack.c.h.b16 %v159
    %v1073 = vunpack.c.l.b16 %v160
    %v1074 = vunpack.c.h.b16 %v160
    %v1075 = vunpack.c.l.b16 %v161
    %v1076 = vunpack.c.h.b16 %v161
    %v1077 = vunpack.c.l.b16 %v162
    %v1078 = vunpack.c.h.b16 %v162
    %v1079 = vunpack.c.l.b16 %v163
    %v1080 = vunpack.c.h.b16 %v163
    %v1081 = vunpack.c.l.b16 %v164
    %v1082 = vunpack.c.h.b16 %v164
    %v1083 = vunpack.c.l.b16 %v165
    %v1084 = vunpack.c.h.b16 %v165
    %v1085 = vunpack.c.l.b16 %v166
    %v1086 = vunpack.c.h.b16 %v166
    %v1087 = vunpack.c.l.b16 %v167
    %v1088 = vunpack.c.h.b16 %v167
    %v1089 = vunpack.c.l.b16 %v168
    %v1090 = vunpack.c.h.b16 %v168
    %v1091 = vunpack.c.l.b16 %v169
    %v1092 = vunpack.c.h.b16 %v169
    %v1093 = vunpack.c.l.b16 %v170
    %v1094 = vunpack.c.h.b16 %v170
    %v1095 = vunpack.c.l.b16 %v171
    %v1096 = vunpack.c.h.b16 %v171
    %v1097 = vunpack.c.l.b16 %v172
    %v1098 = vunpack.c.h.b16 %v172
    %v1099 = vunpack.c.l.b16 %v173
    %v1100 = vunpack.c.h.b16 %v173
    %v1101 = vunpack.c.l.b16 %v174
    %v1102 = vunpack.c.h.b16 %v174
    %v1103 = vunpack.c.l.b16 %v175
    %v1104 = vunpack.c.h.b16 %v175
    %v1105 = vunpack.c.l.b16 %v176
    %v1106 = vunpack.c.h.b16 %v176
    %v1107 = vunpack.c.l.b16 %v177
    %v1108 = vunpack.c.h.b16 %v177
    %v1109 = vunpack.c.l.b16 %v178
    %v1110 = vunpack.c.h.b16 %v178
    %v1111 = vunpack.c.l.b16 %v179
    %v1112 = vunpack.c.h.b16 %v179
    %v1113 = vunpack.c.l.b16 %v180
    %v1114 = vunpack.c.h.b16 %v180
    %v1115 = vunpack.c.l.b16 %v181
    %v1116 = vunpack.c.h.b16 %v181
    %v1117 = vunpack.c.l.b16 %v182
    %v1118 = vunpack.c.h.b16 %v182
    %v1119 = vunpack.c.l.b16 %v183
    %v1120 = vunpack.c.h.b16 %v183
    %v1121 = vunpack.c.l.b16 %v184
    %v1122 = vunpack.c.h.b16 %v184
    %v1123 = vunpack.c.l.b16 %v185
    %v1124 = vunpack.c.h.b16 %v185
    %v1125 = vunpack.c.l.b16 %v186
    %v1126 = vunpack.c.h.b16 %v186
    %v1127 = vunpack.c.l.b16 %v187
    %v1128 = vunpack.c.h.b16 %v187
    %v1129 = vunpack.c.l.b16 %v188
    %v1130 = vunpack.c.h.b16 %v188
    %v1131 = vunpack.c.l.b16 %v189
    %v1132 = vunpack.c.h.b16 %v189
    %v1133 = vunpack.c.l.b16 %v190
    %v1134 = vunpack.c.h.b16 %v190
    %v1135 = vunpack.c.l.b16 %v191
    %v1136 = vunpack.c.h.b16 %v191
    %v1137 = vunpack.c.l.b16 %v192
    %v1138 = vunpack.c.h.b16 %v192
    %v1139 = vunpack.c.l.b16 %v193
    %v1140 = vunpack.c.h.b16 %v193
    %v1141 = vunpack.c.l.b16 %v194
    %v1142 = vunpack.c.h.b16 %v194
    %v1143 = vunpack.c.l.b16 %v195
    %v1144 = vunpack.c.h.b16 %v195
    %v1145 = vunpack.c.l.b16 %v196
    %v1146 = vunpack.c.h.b16 %v196
    %v1147 = vunpack.c.l.b16 %v197
    %v1148 = vunpack.c.h.b16 %v197
    %v1149 = vunpack.c.l.b16 %v198
    %v1150 = vunpack.c.h.b16 %v198
    %v1151 = vunpack.c.l.b16 %v199
    %v1152 = vunpack.c.h.b16 %v199
    %v1153 = vunpack.c.l.b16 %v200
    %v1154 = vunpack.c.h.b16 %v200
    %v1155 = vunpack.c.l.b16 %v201
    %v1156 = vunpack.c.h.b16 %v201
    %v1157 = vunpack.c.l.b16 %v202
    %v1158 = vunpack.c.h.b16 %v202
    %v1159 = vunpack.c.l.b16 %v203
    %v1160 = vunpack.c.h.b16 %v203
    %v1161 = vunpack.c.l.b16 %v204
    %v1162 = vunpack.c.h.b16 %v204
    %v1163 = vunpack.c.l.b16 %v205
    %v1164 = vunpack.c.h.b16 %v205
    %v1165 = vunpack.c.l.b16 %v206
    %v1166 = vunpack.c.h.b16 %v206
    %v1167 = vunpack.c.l.b16 %v207
    %v1168 = vunpack.c.h.b16 %v207
    %v1169 = vunpack.c.l.b16 %v208
    %v1170 = vunpack.c.h.b16 %v208
    %v1171 = vunpack.c.l.b16 %v209
    %v1172 = vunpack.c.h.b16 %v209
    %v1173 = vunpack.c.l.b16 %v210
    %v1174 = vunpack.c.h.b16 %v210
    %v1175 = vunpack.c.l.b16 %v211
    %v1176 = vunpack.c.h.b16 %v211
    %v1177 = vunpack.c.l.b16 %v212
    %v1178 = vunpack.c.h.b16 %v212
    %v1179 = vunpack.c.l.b16 %v213
    %v1180 = vunpack.c.h.b16 %v213
    %v1181 = vunpack.c.l.b16 %v214
    %v1182 = vunpack.c.h.b16 %v214
    %v1183 = vunpack.c.l.b16 %v215
    %v1184 = vunpack.c.h.b16 %v215
    %v1185 = vunpack.c.l.b16 %v216
    %v1186 = vunpack.c.h.b16 %v216
    %v1187 = vunpack.c.l.b16 %v217
    %v1188 = vunpack.c.h.b16 %v217
    %v1189 = vunpack.c.l.b16 %v218
    %v1190 = vunpack.c.h.b16 %v218
    %v1191 = vunpack.c.l.b16 %v219
    %v1192 = vunpack.c.h.b16 %v219
    %v1193 = vunpack.c.l.b16 %v220
    %v1194 = vunpack.c.h.b16 %v220
    %v1195 = vunpack.c.l.b16 %v221
    %v1196 = vunpack.c.h.b16 %v221
    %v1197 = vunpack.c.l.b16 %v222
    %v1198 = vunpack.c.h.b16 %v222
    %v1199 = vunpack.c.l.b16 %v223
    %v1200 = vunpack.c.h.b16 %v223
    %v1201 = vunpack.c.l.b16 %v224
    %v1202 = vunpack.c.h.b16 %v224
    %v1203 = vunpack.c.l.b16 %v225
    %v1204 = vunpack.c.h.b16 %v225
    %v1205 = vunpack.c.l.b16 %v226
    %v1206 = vunpack.c.h.b16 %v226
    %v1207 = vunpack.c.l.b16 %v227
    %v1208 = vunpack.c.h.b16 %v227
    %v1209 = vunpack.c.l.b16 %v228
    %v1210 = vunpack.c.h.b16 %v228
    %v1211 = vunpack.c.l.b16 %v229
    %v1212 = vunpack.c.h.b16 %v229
    %v1213 = vunpack.c.l.b16 %v230
    %v1214 = vunpack.c.h.b16 %v230
    %v1215 = vunpack.c.l.b16 %v231
    %v1216 = vunpack.c.h.b16 %v231
    %v1217 = vunpack.c.l.b16 %v232
    %v1218 = vunpack.c.h.b16 %v232
    %v1219 = vunpack.c.l.b16 %v233
    %v1220 = vunpack.c.h.b16 %v233
    %v1221 = vpack.c.b16 %v1031, %v1029
    %v1222 = vpack.c.b16 %v1032, %v1030
    %v1223 = vpack.c.b16 %v1035, %v1033
    %v1224 = vpack.c.b16 %v1036, %v1034
    %v1225 = vpack.c.b16 %v1039, %v1037
    %v1226 = vpack.c.b16 %v1040, %v1038
    %v1227 = vpack.c.b16 %v1043, %v1041
    %v1228 = vpack.c.b16 %v1044, %v1042
    %v1229 = vpack.c.b16 %v1047, %v1045
    %v1230 = vpack.c.b16 %v1048, %v1046
    %v1231 = vpack.c.b16 %v1051, %v1049
    %v1232 = vpack.c.b16 %v1052, %v1050
    %v1233 = vpack.c.b16 %v1055, %v1053
    %v1234 = vpack.c.b16 %v1056, %v1054
    %v1235 = vpack.c.b16 %v1059, %v1057
    %v1236 = vpack.c.b16 %v1060, %v1058
    %v1237 = vpack.c.b16 %v1063, %v1061
    %v1238 = vpack.c.b16 %v1064, %v1062
    %v1239 = vpack.c.b16 %v1067, %v1065
    %v1240 = vpack.c.b16 %v1068, %v1066
    %v1241 = vpack.c.b16 %v1071, %v1069
    %v1242 = vpack.c.b16 %v1072, %v1070
    %v1243 = vpack.c.b16 %v1075, %v1073
    %v1244 = vpack.c.b16 %v1076, %v1074
    %v1245 = vpack.c.b16 %v1079, %v1077
    %v1246 = vpack.c.b16 %v1080, %v1078
    %v1247 = vpack.c.b16 %v1083, %v1081
    %v1248 = vpack.c.b16 %v1084, %v1082
    %v1249 = vpack.c.b16 %v1087, %v1085
    %v1250 = vpack.c.b16 %v1088, %v1086
    %v1251 = vpack.c.b16 %v1091, %v1089
    %v1252 = vpack.c.b16 %v1092, %v1090
    %v1253 = vpack.c.b16 %v1095, %v1093
    %v1254 = vpack.c.b16 %v1096, %v1094
    %v1255 = vpack.c.b16 %v1099, %v1097
    %v1256 = vpack.c.b16 %v1100, %v1098
    %v1257 = vpack.c.b16 %v1103, %v1101
    %v1258 = vpack.c.b16 %v1104, %v1102
    %v1259 = vpack.c.b16 %v1107, %v1105
    %v1260 = vpack.c.b16 %v1108, %v1106
    %v1261 = vpack.c.b16 %v1111, %v1109
    %v1262 = vpack.c.b16 %v1112, %v1110
    %v1263 = vpack.c.b16 %v1115, %v1113
    %v1264 = vpack.c.b16 %v1116, %v1114
    %v1265 = vpack.c.b16 %v1119, %v1117
    %v1266 = vpack.c.b16 %v1120, %v1118
    %v1267 = vpack.c.b16 %v1123, %v1121
    %v1268 = vpack.c.b16 %v1124, %v1122
    %v1269 = vpack.c.b16 %v1127, %v1125
    %v1270 = vpack.c.b16 %v1128, %v1126
    %v1271 = vpack.c.b16 %v1131, %v1129
    %v1272 = vpack.c.b16 %v1132, %v1130
    %v1273 = vpack.c.b16 %v1135, %v1133
    %v1274 = vpack.c.b16 %v1136, %v1134
    %v1275 = vpack.c.b16 %v1139, %v1137
    %v1276 = vpack.c.b16 %v1140, %v1138
    %v1277 = vpack.c.b16 %v1143, %v1141
    %v1278 = vpack.c.b16 %v1144, %v1142
    %v1279 = vpack.c.b16 %v1147, %v1145
    %v1280 = vpack.c.b16 %v1148, %v1146
    %v1281 = vpack.c.b16 %v1151, %v1149
    %v1282 = vpack.c.b16 %v1152, %v1150
    %v1283 = vpack.c.b16 %v1155, %v1153
    %v1284 = vpack.c.b16 %v1156, %v1154
    %v1285 = vpack.c.b16 %v1159, %v1157
    %v1286 = vpack.c.b16 %v1160, %v1158
    %v1287 = vpack.c.b16 %v1163, %v1161
    %v1288 = vpack.c.b16 %v1164, %v1162
    %v1289 = vpack.c.b16 %v1167, %v1165
    %v1290 = vpack.c.b16 %v1168, %v1166
    %v1291 = vpack.c.b16 %v1171, %v1169
    %v1292 = vpack.c.b16 %v1172, %v1170
    %v1293 = vpack.c.b16 %v1175, %v1173
    %v1294 = vpack.c.b16 %v1176, %v1174
    %v1295 = vpack.c.b16 %v1179, %v1177
    %v1296 = vpack.c.b16 %v1180, %v1178
    %v1297 = vpack.c.b16 %v1183, %v1181
    %v1298 = vpack.c.b16 %v1184, %v1182
    %v1299 = vpack.c.b16 %v1187, %v1185
    %v1300 = vpack.c.b16 %v1188, %v1186
    %v1301 = vpack.c.b16 %v1191, %v1189
    %v1302 = vpack.c.b16 %v1192, %v1190
    %v1303 = vpack.c.b16 %v1195, %v1193
    %v1304 = vpack.c.b16 %v1196, %v1194
    %v1305 = vpack.c.b16 %v1199, %v1197
    %v1306 = vpack.c.b16 %v1200, %v1198
    %v1307 = vpack.c.b16 %v1203, %v1201
    %v1308 = vpack.c.b16 %v1204, %v1202
    %v1309 = vpack.c.b16 %v1207, %v1205
    %v1310 = vpack.c.b16 %v1208, %v1206
    %v1311 = vpack.c.b16 %v1211, %v1209
    %v1312 = vpack.c.b16 %v1212, %v1210
    %v1313 = vpack.c.b16 %v1215, %v1213
    %v1314 = vpack.c.b16 %v1216, %v1214
    %v1315 = vpack.c.b16 %v1219, %v1217
    %v1316 = vpack.c.b16 %v1220, %v1218
    %1413 = vmatprep.subr.bf16.mxu0 %v1222
    %1414 = vmatpush1.bf16.msra.mxu0 %v1221
    %1415 = vmatprep.subr.bf16.mxu0 %v1224
    %1416 = vmatpush1.bf16.msra.mxu0 %v1223
    %1417 = vmatprep.subr.bf16.mxu0 %v1226
    %1418 = vmatpush1.bf16.msra.mxu0 %v1225
    %1419 = vmatprep.subr.bf16.mxu0 %v1228
    %1420 = vmatpush1.bf16.msra.mxu0 %v1227
    %1421 = vmatprep.subr.bf16.mxu0 %v1230
    %1422 = vmatpush1.bf16.msra.mxu0 %v1229
    %1423 = vmatprep.subr.bf16.mxu0 %v1232
    %1424 = vmatpush1.bf16.msra.mxu0 %v1231
    %1425 = vmatprep.subr.bf16.mxu0 %v1234
    %1426 = vmatpush1.bf16.msra.mxu0 %v1233
    %1427 = vmatprep.subr.bf16.mxu0 %v1236
    %1428 = vmatpush1.bf16.msra.mxu0 %v1235
    %1429 = vmatprep.subr.bf16.mxu0 %v1238
    %1430 = vmatpush1.bf16.msra.mxu0 %v1237
    %1431 = vmatprep.subr.bf16.mxu0 %v1240
    %1432 = vmatpush1.bf16.msra.mxu0 %v1239
    %1433 = vmatprep.subr.bf16.mxu0 %v1242
    %1434 = vmatpush1.bf16.msra.mxu0 %v1241
    %1435 = vmatprep.subr.bf16.mxu0 %v1244
    %1436 = vmatpush1.bf16.msra.mxu0 %v1243
    %1437 = vmatprep.subr.bf16.mxu0 %v1246
    %1438 = vmatpush1.bf16.msra.mxu0 %v1245
    %1439 = vmatprep.subr.bf16.mxu0 %v1248
    %1440 = vmatpush1.bf16.msra.mxu0 %v1247
    %1441 = vmatprep.subr.bf16.mxu0 %v1250
    %1442 = vmatpush1.bf16.msra.mxu0 %v1249
    %1443 = vmatprep.subr.bf16.mxu0 %v1252
    %1444 = vmatpush1.bf16.msra.mxu0 %v1251
    %1445 = vmatprep.mubr.bf16.mxu0 %v92
    %1446 = vmatmul.mubr.bf16.gmra.mrb[0].mxu0 %v91
    %v1447 = vpop.f32.mrb[0].mxu0
    %v1448 = vadd.f32 %v927, %v1447
    %v1449 = vpop.f32.mrb[0].mxu0
    %v1450 = vadd.f32 %v929, %v1449
    %v1451 = vpop.f32.mrb[0].mxu0
    %v1452 = vpop.f32.mrb[0].mxu0
    %1453 = vdwg.mxu0
    %1454 = vmatprep.subr.bf16.mxu0 %v1254
    %1455 = vmatpush1.bf16.msra.mxu0 %v1253
    %1456 = vmatprep.subr.bf16.mxu0 %v1256
    %1457 = vmatpush1.bf16.msra.mxu0 %v1255
    %1458 = vmatprep.subr.bf16.mxu0 %v1258
    %1459 = vmatpush1.bf16.msra.mxu0 %v1257
    %1460 = vmatprep.subr.bf16.mxu0 %v1260
    %1461 = vmatpush1.bf16.msra.mxu0 %v1259
    %1462 = vmatprep.subr.bf16.mxu0 %v1262
    %1463 = vmatpush1.bf16.msra.mxu0 %v1261
    %1464 = vmatprep.subr.bf16.mxu0 %v1264
    %1465 = vmatpush1.bf16.msra.mxu0 %v1263
    %1466 = vmatprep.subr.bf16.mxu0 %v1266
    %1467 = vmatpush1.bf16.msra.mxu0 %v1265
    %1468 = vmatprep.subr.bf16.mxu0 %v1268
    %1469 = vmatpush1.bf16.msra.mxu0 %v1267
    %1470 = vmatprep.subr.bf16.mxu0 %v1270
    %1471 = vmatpush1.bf16.msra.mxu0 %v1269
    %1472 = vmatprep.subr.bf16.mxu0 %v1272
    %1473 = vmatpush1.bf16.msra.mxu0 %v1271
    %1474 = vmatprep.subr.bf16.mxu0 %v1274
    %1475 = vmatpush1.bf16.msra.mxu0 %v1273
    %1476 = vmatprep.subr.bf16.mxu0 %v1276
    %1477 = vmatpush1.bf16.msra.mxu0 %v1275
    %1478 = vmatprep.subr.bf16.mxu0 %v1278
    %1479 = vmatpush1.bf16.msra.mxu0 %v1277
    %1480 = vmatprep.subr.bf16.mxu0 %v1280
    %1481 = vmatpush1.bf16.msra.mxu0 %v1279
    %1482 = vmatprep.subr.bf16.mxu0 %v1282
    %1483 = vmatpush1.bf16.msra.mxu0 %v1281
    %1484 = vmatprep.subr.bf16.mxu0 %v1284
    %1485 = vmatpush1.bf16.msra.mxu0 %v1283
    %1486 = vmatprep.mubr.bf16.mxu0 %v94
    %1487 = vmatmul.mubr.bf16.gmra.mrb[0].mxu0 %v93
    %v1488 = vpop.f32.mrb[0].mxu0
    %v1489 = vadd.f32 %v1448, %v1488
    %v1490 = vpop.f32.mrb[0].mxu0
    %v1491 = vadd.f32 %v1450, %v1490
    %v1492 = vpop.f32.mrb[0].mxu0
    %v1493 = vpop.f32.mrb[0].mxu0
    %1494 = vdwg.mxu0
    %1495 = vmatprep.subr.bf16.mxu0 %v1286
    %1496 = vmatpush1.bf16.msra.mxu0 %v1285
    %1497 = vmatprep.subr.bf16.mxu0 %v1288
    %1498 = vmatpush1.bf16.msra.mxu0 %v1287
    %1499 = vmatprep.subr.bf16.mxu0 %v1290
    %1500 = vmatpush1.bf16.msra.mxu0 %v1289
    %1501 = vmatprep.subr.bf16.mxu0 %v1292
    %1502 = vmatpush1.bf16.msra.mxu0 %v1291
    %1503 = vmatprep.subr.bf16.mxu0 %v1294
    %1504 = vmatpush1.bf16.msra.mxu0 %v1293
    %1505 = vmatprep.subr.bf16.mxu0 %v1296
    %1506 = vmatpush1.bf16.msra.mxu0 %v1295
    %1507 = vmatprep.subr.bf16.mxu0 %v1298
    %1508 = vmatpush1.bf16.msra.mxu0 %v1297
    %1509 = vmatprep.subr.bf16.mxu0 %v1300
    %1510 = vmatpush1.bf16.msra.mxu0 %v1299
    %1511 = vmatprep.subr.bf16.mxu0 %v1302
    %1512 = vmatpush1.bf16.msra.mxu0 %v1301
    %1513 = vmatprep.subr.bf16.mxu0 %v1304
    %1514 = vmatpush1.bf16.msra.mxu0 %v1303
    %1515 = vmatprep.subr.bf16.mxu0 %v1306
    %1516 = vmatpush1.bf16.msra.mxu0 %v1305
    %1517 = vmatprep.subr.bf16.mxu0 %v1308
    %1518 = vmatpush1.bf16.msra.mxu0 %v1307
    %1519 = vmatprep.subr.bf16.mxu0 %v1310
    %1520 = vmatpush1.bf16.msra.mxu0 %v1309
    %1521 = vmatprep.subr.bf16.mxu0 %v1312
    %1522 = vmatpush1.bf16.msra.mxu0 %v1311
    %1523 = vmatprep.subr.bf16.mxu0 %v1314
    %1524 = vmatpush1.bf16.msra.mxu0 %v1313
    %1525 = vmatprep.subr.bf16.mxu0 %v1316
    %1526 = vmatpush1.bf16.msra.mxu0 %v1315
    %1527 = vmatprep.mubr.bf16.mxu0 %v96
    %1528 = vmatmul.mubr.bf16.gmra.mrb[0].mxu0 %v95
    %v1529 = vpop.f32.mrb[0].mxu0
    %v1530 = vadd.f32 %v1489, %v1529
    %v1531 = vpop.f32.mrb[0].mxu0
    %v1532 = vadd.f32 %v1491, %v1531
    %v1533 = vpop.f32.mrb[0].mxu0
    %v1534 = vpop.f32.mrb[0].mxu0
    %1535 = vdwg.mxu0
    %v1536 = vld [vmem:[%s4] sm:$0x3]
    %v1538 = vlaneseq
    %v1539 = vshrl.u32 %v1538, 7
    %v1540 = vsub.s32 0, %v1539
    %v1541 = vrot.slane %v1536, %v1540
    %v1542 = vlaneseq
    %v1543 = vshrl.u32 %v1542, 7
    %v1544 = vsub.s32 1, %v1543
    %v1545 = vrot.slane %v1536, %v1544
    %v1548 = vadd.f32 %v1530, %v1541
    %v1549 = vadd.f32 %v1532, %v1545
    %v1550 = vmax.f32 %v1548, 0.0
    %v1551 = vmax.f32 %v1549, 0.0
    %v1552 = vpack.c.bf16 %v1550, %v1550
    %v1553 = vpack.c.bf16 %v1551, %v1551
    %v1554 = vld [vmem:[%s5] sm:$0xf]
    %v1555 = vld [vmem:[%s5 + $0x4] sm:$0xf]
    %v1556 = vld [vmem:[%s5 + $0x8] sm:$0xf]
    %v1557 = vld [vmem:[%s5 + $0xc] sm:$0xf]
    %v1558 = vld [vmem:[%s5 + $0x10] sm:$0xf]
    %v1559 = vld [vmem:[%s5 + $0x14] sm:$0xf]
    %v1560 = vld [vmem:[%s5 + $0x18] sm:$0xf]
    %v1561 = vld [vmem:[%s5 + $0x1c] sm:$0xf]
    %v1562 = vld [vmem:[%s5 + $0x20] sm:$0xf]
    %v1563 = vld [vmem:[%s5 + $0x24] sm:$0xf]
    %v1564 = vld [vmem:[%s5 + $0x28] sm:$0xf]
    %v1565 = vld [vmem:[%s5 + $0x2c] sm:$0xf]
    %v1566 = vld [vmem:[%s5 + $0x30] sm:$0xf]
    %v1567 = vld [vmem:[%s5 + $0x34] sm:$0xf]
    %v1568 = vld [vmem:[%s5 + $0x38] sm:$0xf]
    %v1569 = vld [vmem:[%s5 + $0x3c] sm:$0xf]
    %v1570 = vld [vmem:[%s5 + $0x40] sm:$0xf]
    %v1571 = vld [vmem:[%s5 + $0x44] sm:$0xf]
    %v1572 = vld [vmem:[%s5 + $0x48] sm:$0xf]
    %v1573 = vld [vmem:[%s5 + $0x4c] sm:$0xf]
    %v1574 = vld [vmem:[%s5 + $0x50] sm:$0xf]
    %v1575 = vld [vmem:[%s5 + $0x54] sm:$0xf]
    %v1576 = vld [vmem:[%s5 + $0x58] sm:$0xf]
    %v1577 = vld [vmem:[%s5 + $0x5c] sm:$0xf]
    %v1578 = vld [vmem:[%s5 + $0x60] sm:$0xf]
    %v1579 = vld [vmem:[%s5 + $0x64] sm:$0xf]
    %v1580 = vld [vmem:[%s5 + $0x68] sm:$0xf]
    %v1581 = vld [vmem:[%s5 + $0x6c] sm:$0xf]
    %v1582 = vld [vmem:[%s5 + $0x70] sm:$0xf]
    %v1583 = vld [vmem:[%s5 + $0x74] sm:$0xf]
    %v1584 = vld [vmem:[%s5 + $0x78] sm:$0xf]
    %v1585 = vld [vmem:[%s5 + $0x7c] sm:$0xf]
    %v1586 = vld [vmem:[%s6] sm:$0x1]
    %v1588 = vlaneseq
    %v1589 = vshrl.u32 %v1588, 7
    %v1590 = vsub.s32 0, %v1589
    %v1591 = vrot.slane %v1586, %v1590
    %v1625 = vunpack.c.l.b16 %v1554
    %v1626 = vunpack.c.l.b16 %v1555
    %v1627 = vunpack.c.l.b16 %v1556
    %v1628 = vunpack.c.l.b16 %v1557
    %v1629 = vunpack.c.l.b16 %v1558
    %v1630 = vunpack.c.l.b16 %v1559
    %v1631 = vunpack.c.l.b16 %v1560
    %v1632 = vunpack.c.l.b16 %v1561
    %v1633 = vunpack.c.l.b16 %v1562
    %v1634 = vunpack.c.l.b16 %v1563
    %v1635 = vunpack.c.l.b16 %v1564
    %v1636 = vunpack.c.l.b16 %v1565
    %v1637 = vunpack.c.l.b16 %v1566
    %v1638 = vunpack.c.l.b16 %v1567
    %v1639 = vunpack.c.l.b16 %v1568
    %v1640 = vunpack.c.l.b16 %v1569
    %v1641 = vunpack.c.l.b16 %v1570
    %v1642 = vunpack.c.l.b16 %v1571
    %v1643 = vunpack.c.l.b16 %v1572
    %v1644 = vunpack.c.l.b16 %v1573
    %v1645 = vunpack.c.l.b16 %v1574
    %v1646 = vunpack.c.l.b16 %v1575
    %v1647 = vunpack.c.l.b16 %v1576
    %v1648 = vunpack.c.l.b16 %v1577
    %v1649 = vunpack.c.l.b16 %v1578
    %v1650 = vunpack.c.l.b16 %v1579
    %v1651 = vunpack.c.l.b16 %v1580
    %v1652 = vunpack.c.l.b16 %v1581
    %v1653 = vunpack.c.l.b16 %v1582
    %v1654 = vunpack.c.l.b16 %v1583
    %v1655 = vunpack.c.l.b16 %v1584
    %v1656 = vunpack.c.l.b16 %v1585
    %v1657 = vpack.c.b16 %v1626, %v1625
    %v1658 = vpack.c.b16 %v1628, %v1627
    %v1659 = vpack.c.b16 %v1630, %v1629
    %v1660 = vpack.c.b16 %v1632, %v1631
    %v1661 = vpack.c.b16 %v1634, %v1633
    %v1662 = vpack.c.b16 %v1636, %v1635
    %v1663 = vpack.c.b16 %v1638, %v1637
    %v1664 = vpack.c.b16 %v1640, %v1639
    %v1665 = vpack.c.b16 %v1642, %v1641
    %v1666 = vpack.c.b16 %v1644, %v1643
    %v1667 = vpack.c.b16 %v1646, %v1645
    %v1668 = vpack.c.b16 %v1648, %v1647
    %v1669 = vpack.c.b16 %v1650, %v1649
    %v1670 = vpack.c.b16 %v1652, %v1651
    %v1671 = vpack.c.b16 %v1654, %v1653
    %v1672 = vpack.c.b16 %v1656, %v1655
    %1689 = vmatprep.subr.bf16.mxu0 0
    %1690 = vmatpush1.bf16.msra.mxu0 %v1657
    %1691 = vmatprep.subr.bf16.mxu0 0
    %1692 = vmatpush1.bf16.msra.mxu0 %v1658
    %1693 = vmatprep.subr.bf16.mxu0 0
    %1694 = vmatpush1.bf16.msra.mxu0 %v1659
    %1695 = vmatprep.subr.bf16.mxu0 0
    %1696 = vmatpush1.bf16.msra.mxu0 %v1660
    %1697 = vmatprep.subr.bf16.mxu0 0
    %1698 = vmatpush1.bf16.msra.mxu0 %v1661
    %1699 = vmatprep.subr.bf16.mxu0 0
    %1700 = vmatpush1.bf16.msra.mxu0 %v1662
    %1701 = vmatprep.subr.bf16.mxu0 0
    %1702 = vmatpush1.bf16.msra.mxu0 %v1663
    %1703 = vmatprep.subr.bf16.mxu0 0
    %1704 = vmatpush1.bf16.msra.mxu0 %v1664
    %1705 = vmatprep.subr.bf16.mxu0 0
    %1706 = vmatpush1.bf16.msra.mxu0 %v1665
    %1707 = vmatprep.subr.bf16.mxu0 0
    %1708 = vmatpush1.bf16.msra.mxu0 %v1666
    %1709 = vmatprep.subr.bf16.mxu0 0
    %1710 = vmatpush1.bf16.msra.mxu0 %v1667
    %1711 = vmatprep.subr.bf16.mxu0 0
    %1712 = vmatpush1.bf16.msra.mxu0 %v1668
    %1713 = vmatprep.subr.bf16.mxu0 0
    %1714 = vmatpush1.bf16.msra.mxu0 %v1669
    %1715 = vmatprep.subr.bf16.mxu0 0
    %1716 = vmatpush1.bf16.msra.mxu0 %v1670
    %1717 = vmatprep.subr.bf16.mxu0 0
    %1718 = vmatpush1.bf16.msra.mxu0 %v1671
    %1719 = vmatprep.subr.bf16.mxu0 0
    %1720 = vmatpush1.bf16.msra.mxu0 %v1672
    %1721 = vmatprep.mubr.bf16.mxu0 %v1553
    %1722 = vmatmul.mubr.bf16.gmra.mrb[0].mxu0 %v1552
    %v1723 = vpop.f32.mrb[0].mxu0
    %v1724 = vadd.f32 %v1591, %v1723
    %v1725 = vpop.f32.mrb[0].mxu0
    %v1726 = vpop.f32.mrb[0].mxu0
    %v1727 = vpop.f32.mrb[0].mxu0
    %1728 = vdwg.mxu0
    %vm1729 = vcmask 25600
    %1730 = vst.msk [vmem:[#allocation7] sm:$0x3] %vm1729, %v1724
    // Predicated region
    $region38: #{tpu_custom_call.1} parent=1 // pred_check
      _
    $region39: #{tpu_custom_call.1} parent=1 // pred_check_branch
      %1732 = sbr.rel (0) target = $region41
    $region40: #{tpu_custom_call.1} parent=1 // pred_region
      %s1734 = ssub.s32 32, 32
      %1735 = vsyncadd [#allocation4], %s1734
      %s1737 = sshll.u32 [#allocation7], 4
      %s1738 = int_to_ptr.vmem [resolvable:$true] %s1737
      %1740 = dma.vmem_to_hbm [thread:$0]  %s1738, 32, %s7, [#allocation4]
    $region41: #{tpu_custom_call.1} parent=1 // pred_fallthru
      _
    // Predicated region
    $region42: #{tpu_custom_call.1} parent=1 // pred_check
      _
    $region43: #{tpu_custom_call.1} parent=1 // pred_check_branch
      %1742 = sbr.rel (0) target = $region45
    $region44: #{tpu_custom_call.1} parent=1 // pred_region
      %1743 = dma.done [#allocation4], 32
    $region45: #{tpu_custom_call.1} parent=1 // pred_fallthru
      _
    %1744 = vsyncpa [#allocation3], 1
    %1745 = vsyncpa [#allocation6], 1
    %1746 = vsyncpa [#allocation4], 1

</llo_original>
